<compile_context>
chip_gen: v6e
topology: v6e:2x2x1
jax: 0.10.0
libtpu: 0.0.40
codegen_flags: <defaults>
</compile_context>

<pallas_src>
import numpy as np
import jax
import jax.numpy as jnp
from jax.experimental import pallas as pl
from jax.experimental.pallas import tpu as pltpu

_LANES = 128                                   # TPU lane width
_SENTINEL = int(np.iinfo(np.int32).min)        # marks "dimension" columns in sup_row
_DEFAULT_TILE_ROWS = 16384                     # original (pre-packing) rows per grid step


def mode_embedding_kernel(x_ref, sup_ref, expand_ref, table_ref, out_ref):
    """Fused mode-translation + embedding kernel (two MXU matmuls per tile).

    x_ref      : (Ts, R*C) int32 -- R = 128/E original rows packed per slab row; each
                                    group of C columns is [global_mode, dims x D]
    sup_ref    : (1,  Wp)  int32 -- per fused column: supported mode value on the K
                                    one-hot slots, SENTINEL on the D dimension slots
    expand_ref : (R*C, Wp) f32   -- constant 0/1 matrix: replicates each group's mode
                                    into its K one-hot slots, moves dims to their slots
    table_ref  : (Wp, 128) f32   -- block-diagonal stack of [mode_table; W] (R blocks)
    out_ref    : (Ts, 128)       -- lane-dense embeddings (R rows x E cols per slab row)
    """
    x_f32 = x_ref[...].astype(jnp.float32)                       # (Ts, R*C)

    # Lane expansion on the MXU (no cross-lane VPU/XLU shuffles needed): each fused
    # column is exactly one input column, so the product is exact in f32.
    x_exp = jnp.dot(x_f32, expand_ref[...],
                    preferred_element_type=jnp.float32)          # (Ts, Wp)

    sup = sup_ref[...]                                           # (1, Wp) int32
    is_dim_col = sup == _SENTINEL                                # (1, Wp) bool

    # One-hot of the global mode against its supported slot; the compare result on
    # dimension columns is discarded by the select below.  Mode values are small
    # integers so the f32 equality compare is exact.
    onehot = (x_exp == sup.astype(jnp.float32)).astype(jnp.float32)
    fused = jnp.where(is_dim_col, x_exp, onehot)                 # (Ts, Wp)

    # Single fused, lane-dense MXU matmul:
    #   mode_table[local_mode] + dims @ W  for R packed rows at once.
    out_ref[...] = jnp.dot(fused, table_ref[...],
                           preferred_element_type=jnp.float32).astype(out_ref.dtype)


def _cdiv(a, b):
    return -(-a // b)


def _round_up(x, m):
    return _cdiv(x, m) * m


def mode_embedding_forward(inputs, supported_modes, mode_table, w,
                           *, tile_rows=_DEFAULT_TILE_ROWS, out_dtype=jnp.float32):
    """Forward pass: returns (translation_mask (B, I) bool, dense embeddings (B*I, E)).

    inputs          : (B, I, 1 + D) int32  -- col 0 = global mode, cols 1: = dims
    supported_modes : (K,)           int32 -- MUST contain unique values (duplicates
                                              would sum two mode_table rows)
    mode_table      : (K, E)         f32   -- per-local-mode embedding
    w               : (D, E)         f32   -- linear projection of dimension channels

    Notes:
      * dims are int32 cast to f32 (exact for |dim| < 2**24, same as the reference).
      * out_dtype=jnp.bfloat16 halves output HBM traffic (~1.4-1.7x on large,
        bandwidth-bound shapes); verify downstream tolerance before enabling.
    """
    B, I, C = inputs.shape
    D = C - 1
    K, E = mode_table.shape
    assert supported_modes.shape[0] == K and w.shape == (D, E)
    # TODO(synk): for E that does not divide 128, pad E up to a divisor/multiple of 128.
    assert _LANES % E == 0, "lane-dense packing requires embedding_dim to divide 128"
    R = _LANES // E                    # original rows packed per lane-dense slab row
    KD = K + D
    Wp = R * KD                        # fused (one-hot + dims) width per slab row

    N = B * I
    flat = inputs.reshape(N, C).astype(jnp.int32)      # free row-major reshape
    modes = flat[:, :1]                                # (N, 1)

    if N == 0:
        return (jnp.zeros((B, I), dtype=bool), jnp.zeros((0, E), dtype=out_dtype))

    # Translation mask computed wrapper-side: trivial K-wide compare that overlaps
    # with the kernel and keeps the kernel's output stream 128-lane dense.
    mask = jnp.any(modes == supported_modes.astype(jnp.int32)[None, :], axis=-1)   # (N,)

    # Pad only to a multiple of R (at most R-1 rows, and a no-op in the common case).
    # The tile-size remainder is handled by the pl.cdiv grid (ragged last block).
    n_pad = _round_up(N, R)
    if n_pad != N:
        flat = jnp.pad(flat, ((0, n_pad - N), (0, 0)), constant_values=-1)
    n_slab = n_pad // R
    x_slab = flat.reshape(n_slab, R * C)               # free row-major reshape

    # ---- tiny resident operands (could be hoisted to module init / cached) ----
    # [supported_modes..., SENTINEL x D] tiled R times.
    sup_group = jnp.concatenate([supported_modes.astype(jnp.int32),
                                 jnp.full((D,), _SENTINEL, dtype=jnp.int32)])       # (KD,)
    sup_row = jnp.tile(sup_group, R).reshape(1, Wp)

    # 0/1 expansion matrix: group j's mode column (j*C) feeds its K one-hot slots,
    # group j's dim columns feed their D slots.
    expand_np = np.zeros((R * C, Wp), dtype=np.float32)
    for j in range(R):
        expand_np[j * C, j * KD:j * KD + K] = 1.0
        for t in range(D):
            expand_np[j * C + 1 + t, j * KD + K + t] = 1.0
    expand = jnp.asarray(expand_np)

    # Block-diagonal stack of [mode_table; W]: block j maps packed row j of a slab row
    # to output lanes [j*E, (j+1)*E).
    stacked = jnp.concatenate([mode_table.astype(jnp.float32),
                               w.astype(jnp.float32)], axis=0)                       # (KD, E)
    table = jnp.kron(jnp.eye(R, dtype=jnp.float32), stacked)                         # (Wp, 128)

    # ---- tile sizing: big tiles to amortise per-step overhead, >= 2 grid steps so
    # the "parallel" axis shards across both v7x TensorCores, multiples of 8 slab rows
    # for the (8, 128) rule. ----
    if n_slab <= 8:
        tile_slab = n_slab                               # single full-extent block
    else:
        desired = max(8, (tile_rows // R // 8) * 8)
        half = _round_up(_cdiv(n_slab, 2), 8)            # cap -> at least 2 grid steps
        tile_slab = min(desired, half)
    grid = (pl.cdiv(n_slab, tile_slab),)

    dense_slab = pl.pallas_call(
        mode_embedding_kernel,
        out_shape=jax.ShapeDtypeStruct((n_slab, _LANES), out_dtype),
        grid=grid,
        in_specs=[
            pl.BlockSpec((tile_slab, R * C), lambda i: (i, 0)),   # row-tiled raw inputs
            pl.BlockSpec((1, Wp), lambda i: (0, 0)),              # resident (tiny)
            pl.BlockSpec((R * C, Wp), lambda i: (0, 0)),          # resident (tiny)
            pl.BlockSpec((Wp, _LANES), lambda i: (0, 0)),         # resident (tiny)
        ],
        out_specs=pl.BlockSpec((tile_slab, _LANES), lambda i: (i, 0)),   # lane-dense out
        compiler_params=pltpu.CompilerParams(
            # Row axis is independent -> megacore sharding on v7x; no-op on v5e/v6e.
            dimension_semantics=("parallel",),
            # Per-step VMEM (double-buffered in+out + resident params) is ~4.7 MB at
            # tile_rows=16384, well under the scoped defaults -> no vmem override.
        ),
    )(x_slab, sup_row, expand, table)

    # (n_slab, 128) row-major is bit-identical to (n_pad, E); slice only when padded.
    dense_emb = dense_slab.reshape(n_pad, E)
    if n_pad != N:
        dense_emb = dense_emb[:N]
    return mask.reshape(B, I), dense_emb


def _reference(inputs_np, num_modes, supported_np, mode_table_np, w_np):
    """Pure-numpy reference mirroring the PyTorch module's forward()."""
    C = inputs_np.shape[-1]
    flat = inputs_np.reshape(-1, C)
    atm = -np.ones((num_modes,), dtype=np.int64)
    atm[supported_np] = np.arange(len(supported_np))
    local = atm[flat[:, 0]]
    ref_mask = local != -1
    dims = flat[ref_mask, 1:].astype(np.float32)
    ref_emb = mode_table_np[local[ref_mask]] + dims @ w_np
    return ref_mask, ref_emb


if __name__ == "__main__":
    # ----- module configuration (mirrors __init__) -----
    embedding_dim = 32
    num_modes = 6          # schemas.shape[0]
    schema_dims = 4        # schemas.shape[1]  -> channels = 1 + 4
    supported_modes = jnp.array([1, 3, 4], dtype=jnp.int32)
    K = int(supported_modes.shape[0])

    key = jax.random.PRNGKey(0)
    k_tab, k_w, k_inp = jax.random.split(key, 3)

    # deterministic parameters for the concrete `embed` implementation
    mode_table = jax.random.normal(k_tab, (K, embedding_dim), dtype=jnp.float32)
    w = jax.random.normal(k_w, (schema_dims, embedding_dim), dtype=jnp.float32) * 0.1

    mode_table_np = np.asarray(mode_table)
    w_np = np.asarray(w)
    supported_np = np.asarray(supported_modes)
    assert np.unique(supported_np).size == K, "supported_modes must be unique"

    def run_case(case_key, B, I):
        k_mode, k_dims = jax.random.split(case_key)
        modes = jax.random.randint(k_mode, (B, I, 1), 0, num_modes, dtype=jnp.int32)
        dims = jax.random.randint(k_dims, (B, I, schema_dims), 0, 50, dtype=jnp.int32)
        inputs = jnp.concatenate([modes, dims], axis=-1)                 # (B, I, 5)

        mask_bool, dense_emb = mode_embedding_forward(inputs, supported_modes,
                                                      mode_table, w)
        mask_bool, dense_emb = jax.block_until_ready((mask_bool, dense_emb))

        # Host-side compaction (dynamic-shape boolean indexing) == forward()'s
        # `valid_inputs = translated_inputs[translation_mask]` contract.
        flat_mask = np.asarray(mask_bool).reshape(-1)
        embeddings = np.asarray(dense_emb)[flat_mask]

        ref_mask, ref_emb = _reference(np.asarray(inputs), num_modes, supported_np,
                                       mode_table_np, w_np)
        assert np.array_equal(flat_mask, ref_mask), f"mask mismatch ({B}x{I})"
        assert embeddings.shape == (int(ref_mask.sum()), embedding_dim)
        np.testing.assert_allclose(embeddings, ref_emb, rtol=1e-5, atol=1e-5)

    keys = jax.random.split(k_inp, 3)
    run_case(keys[0], 2, 8)       # small spec shape: single full-extent block
    run_case(keys[1], 2, 600)     # tiled path: >= 2 grid steps + ragged last block
    run_case(keys[2], 1, 13)      # N % R != 0: exercises the tiny pad / output slice

    print("KERNEL_OK")
</pallas_src>

<mosaic_0001>
module attributes {stable_mosaic.version = 11 : i64} {
  func.func @mode_embedding_kernel(%arg0: i32, %arg1: memref<4x20xi32, #tpu.memory_space<vmem>>, %arg2: memref<1x28xi32, #tpu.memory_space<vmem>>, %arg3: memref<20x28xf32, #tpu.memory_space<vmem>>, %arg4: memref<28x128xf32, #tpu.memory_space<vmem>>, %arg5: memref<4x128xf32, #tpu.memory_space<vmem>>) attributes {dimension_semantics = [#tpu.dimension_semantics<parallel>], iteration_bounds = array<i64: 1>, scalar_prefetch = 0 : i64, scratch_operands = 0 : i64, tpu.core_type = #tpu.core_type<tc>, window_params = [{transform_indices = @transform_0, window_bounds = array<i64: 4, 20>}, {pipeline_mode = #tpu.pipeline_mode<synchronous>, transform_indices = @transform_1, window_bounds = array<i64: 1, 28>}, {pipeline_mode = #tpu.pipeline_mode<synchronous>, transform_indices = @transform_2, window_bounds = array<i64: 20, 28>}, {pipeline_mode = #tpu.pipeline_mode<synchronous>, transform_indices = @transform_3, window_bounds = array<i64: 28, 128>}, {transform_indices = @transform_4, window_bounds = array<i64: 4, 128>}]} {
    %c0 = arith.constant 0 : index
    %c0_0 = arith.constant 0 : index
    %0 = vector.load %arg1[%c0, %c0_0] : memref<4x20xi32, #tpu.memory_space<vmem>>, vector<4x20xi32>
    %1 = arith.sitofp %0 : vector<4x20xi32> to vector<4x20xf32>
    %c0_1 = arith.constant 0 : index
    %c0_2 = arith.constant 0 : index
    %2 = vector.load %arg3[%c0_1, %c0_2] : memref<20x28xf32, #tpu.memory_space<vmem>>, vector<20x28xf32>
    %cst = arith.constant dense<0.000000e+00> : vector<4x28xf32>
    %3 = tpu.matmul %1, %2, %cst {dimension_numbers = #tpu.dot_dimension_numbers<[1], [0], [0], [1], [0, 0, 1, 1], [], []>} : vector<4x20xf32>, vector<20x28xf32>, vector<4x28xf32> -> vector<4x28xf32>
    %c0_3 = arith.constant 0 : index
    %c0_4 = arith.constant 0 : index
    %4 = vector.load %arg2[%c0_3, %c0_4] : memref<1x28xi32, #tpu.memory_space<vmem>>, vector<1x28xi32>
    %c-2147483648_i32 = arith.constant -2147483648 : i32
    %5 = vector.broadcast %c-2147483648_i32 : i32 to vector<1x28xi32>
    %6 = arith.cmpi eq, %4, %5 : vector<1x28xi32>
    %7 = arith.sitofp %4 : vector<1x28xi32> to vector<1x28xf32>
    %8 = vector.broadcast %7 : vector<1x28xf32> to vector<4x28xf32>
    %9 = arith.cmpf oeq, %3, %8 : vector<4x28xf32>
    %10 = arith.extui %9 : vector<4x28xi1> to vector<4x28xi32>
    %11 = arith.sitofp %10 : vector<4x28xi32> to vector<4x28xf32>
    %12 = vector.shape_cast %6 : vector<1x28xi1> to vector<1x28xi1>
    %13 = vector.broadcast %12 : vector<1x28xi1> to vector<4x28xi1>
    %14 = arith.select %13, %3, %11 : vector<4x28xi1>, vector<4x28xf32>
    %c0_5 = arith.constant 0 : index
    %c0_6 = arith.constant 0 : index
    %15 = vector.load %arg4[%c0_5, %c0_6] : memref<28x128xf32, #tpu.memory_space<vmem>>, vector<28x128xf32>
    %cst_7 = arith.constant dense<0.000000e+00> : vector<4x128xf32>
    %16 = tpu.matmul %14, %15, %cst_7 {dimension_numbers = #tpu.dot_dimension_numbers<[1], [0], [0], [1], [0, 0, 1, 1], [], []>} : vector<4x28xf32>, vector<28x128xf32>, vector<4x128xf32> -> vector<4x128xf32>
    %c0_8 = arith.constant 0 : index
    %c0_9 = arith.constant 0 : index
    %17 = vector.load %arg5[%c0_8, %c0_9] : memref<4x128xf32, #tpu.memory_space<vmem>>, vector<4x128xf32>
    tpu.vector_store %arg5[%c0_8, %c0_9], %16 {strides = array<i32>} : memref<4x128xf32, #tpu.memory_space<vmem>>, vector<4x128xf32>,
    return
  }
  func.func @transform_0(%arg0: i32) -> (i32, i32) {
    %c0_i32 = arith.constant 0 : i32
    %c0_i32_0 = arith.constant 0 : i32
    return %arg0, %c0_i32 : i32, i32
  }
  func.func @transform_1(%arg0: i32) -> (i32, i32) {
    %c0_i32 = arith.constant 0 : i32
    %c0_i32_0 = arith.constant 0 : i32
    %c0_i32_1 = arith.constant 0 : i32
    return %c0_i32, %c0_i32_0 : i32, i32
  }
  func.func @transform_2(%arg0: i32) -> (i32, i32) {
    %c0_i32 = arith.constant 0 : i32
    %c0_i32_0 = arith.constant 0 : i32
    %c0_i32_1 = arith.constant 0 : i32
    return %c0_i32, %c0_i32_0 : i32, i32
  }
  func.func @transform_3(%arg0: i32) -> (i32, i32) {
    %c0_i32 = arith.constant 0 : i32
    %c0_i32_0 = arith.constant 0 : i32
    %c0_i32_1 = arith.constant 0 : i32
    return %c0_i32, %c0_i32_0 : i32, i32
  }
  func.func @transform_4(%arg0: i32) -> (i32, i32) {
    %c0_i32 = arith.constant 0 : i32
    %c0_i32_0 = arith.constant 0 : i32
    return %arg0, %c0_i32 : i32, i32
  }
}

</mosaic_0001>

<llo_original>
// kernel: tpu_custom_call.1
$region0: #{tpu_custom_call.1}
  #allocation0 [shape = 'u32[]', space=smem, size = 0x4, offset = 0x4, fixed_abs, tag = 'smem constant byte address 0x4 - core index']
  #allocation1 [shape = 'u32[144,128]{1,0:T(1,128)}', space=vmem, size = 0x12000, scoped, tag = 'internal scratch']
  %s0 = inlined_call_operand.hbm [shape: s32[4,20], index: 0, kind: input, shape index: {}]
  %s1 = inlined_call_operand.vmem [shape: s32[1,28], index: 1, kind: input, shape index: {}]
  %s2 = inlined_call_operand.hbm [shape: f32[20,28], index: 2, kind: input, shape index: {}]
  %s3 = inlined_call_operand.hbm [shape: f32[28,128], index: 3, kind: input, shape index: {}]
  %s4 = inlined_call_operand.hbm [shape: f32[4,128], index: 4, kind: output, shape index: {}]
  %s5 = sld [smem:[#allocation0]]
  $region38: #{tpu_custom_call.1} parent=0
    _
  %s7 = ssub.s32 1, %s5
  %s8 = scalar_select 0, %s7, %s5
  $region1: #{tpu_custom_call.1} parent=0
    #allocation2 [shape = 'u8[2048]{0}', space=vmem, size = 0x800, scoped, tag = 'input window, operand 0, single buffered']
    #allocation3 [shape = 's32[1]{0}', space=sflag, size = 0x4, scoped, tag = 'scoped memory for tpu_custom_call.1']
    #allocation4 [shape = 's32[1]{0}', space=sflag, size = 0x4, scoped, tag = 'scoped memory for tpu_custom_call.1']
    #allocation5 [shape = 'u8[12288]{0}', space=vmem, size = 0x3000, scoped, tag = 'input window, operand 2, single buffered']
    #allocation6 [shape = 's32[1]{0}', space=sflag, size = 0x4, scoped, tag = 'scoped memory for tpu_custom_call.1']
    #allocation7 [shape = 'u8[16384]{0}', space=vmem, size = 0x4000, scoped, tag = 'input window, operand 3, single buffered']
    #allocation8 [shape = 'u8[2048]{0}', space=vmem, size = 0x800, scoped, tag = 'output window, operand 0, single buffered']
    %9 = vsyncpa [#allocation3], 0
    %10 = vsyncpa [#allocation6], 0
    %11 = vsyncpa [#allocation4], 0
    // Predicated region
    $region2: #{tpu_custom_call.1} parent=1 // pred_check
      _
    $region3: #{tpu_custom_call.1} parent=1 // pred_check_branch
      %13 = sbr.rel (0) target = $region5
    $region4: #{tpu_custom_call.1} parent=1 // pred_region
      %s15 = ssub.s32 64, 64
      %16 = vsyncadd [#allocation3], %s15
      %s18 = sshll.u32 [#allocation2], 4
      %s19 = int_to_ptr.vmem [resolvable:$true] %s18
      %21 = dma.hbm_to_vmem [thread:$0]  %s0, 64, %s19, [#allocation3]
    $region5: #{tpu_custom_call.1} parent=1 // pred_fallthru
      _
    // Predicated region
    $region6: #{tpu_custom_call.1} parent=1 // pred_check
      _
    $region7: #{tpu_custom_call.1} parent=1 // pred_check_branch
      %23 = sbr.rel (0) target = $region9
    $region8: #{tpu_custom_call.1} parent=1 // pred_region
      _
    $region9: #{tpu_custom_call.1} parent=1 // pred_fallthru
      _
    // Predicated region
    $region10: #{tpu_custom_call.1} parent=1 // pred_check
      _
    $region11: #{tpu_custom_call.1} parent=1 // pred_check_branch
      %25 = sbr.rel (0) target = $region13
    $region12: #{tpu_custom_call.1} parent=1 // pred_region
      %s27 = ssub.s32 384, 384
      %28 = vsyncadd [#allocation6], %s27
      %s29 = sshll.u32 [#allocation5], 4
      %s30 = int_to_ptr.vmem [resolvable:$true] %s29
      %35 = dma.hbm_to_vmem [thread:$0]  %s2, 384, %s30, [#allocation6], 128, 128, 8
    $region13: #{tpu_custom_call.1} parent=1 // pred_fallthru
      _
    // Predicated region
    $region14: #{tpu_custom_call.1} parent=1 // pred_check
      _
    $region15: #{tpu_custom_call.1} parent=1 // pred_check_branch
      %37 = sbr.rel (0) target = $region17
    $region16: #{tpu_custom_call.1} parent=1 // pred_region
      %s39 = ssub.s32 512, 512
      %40 = vsyncadd [#allocation6], %s39
      %s41 = sshll.u32 [#allocation7], 4
      %s42 = int_to_ptr.vmem [resolvable:$true] %s41
      %47 = dma.hbm_to_vmem [thread:$0]  %s3, 512, %s42, [#allocation6], 128, 128, 8
    $region17: #{tpu_custom_call.1} parent=1 // pred_fallthru
      _
    // Predicated region
    $region18: #{tpu_custom_call.1} parent=1 // pred_check
      _
    $region19: #{tpu_custom_call.1} parent=1 // pred_check_branch
      %49 = sbr.rel (0) target = $region21
    $region20: #{tpu_custom_call.1} parent=1 // pred_region
      %50 = dma.done [#allocation3], 64
    $region21: #{tpu_custom_call.1} parent=1 // pred_fallthru
      _
    // Predicated region
    $region22: #{tpu_custom_call.1} parent=1 // pred_check
      _
    $region23: #{tpu_custom_call.1} parent=1 // pred_check_branch
      %52 = sbr.rel (0) target = $region25
    $region24: #{tpu_custom_call.1} parent=1 // pred_region
      %53 = dma.done [#allocation6], 384
    $region25: #{tpu_custom_call.1} parent=1 // pred_fallthru
      _
    // Predicated region
    $region26: #{tpu_custom_call.1} parent=1 // pred_check
      _
    $region27: #{tpu_custom_call.1} parent=1 // pred_check_branch
      %55 = sbr.rel (0) target = $region29
    $region28: #{tpu_custom_call.1} parent=1 // pred_region
      %56 = dma.done [#allocation6], 512
    $region29: #{tpu_custom_call.1} parent=1 // pred_fallthru
      _
    %v57 = vld [vmem:[#allocation2] sm:$0xf]
    %v58 = vcvt.s32.f32 %v57
    %v59 = vld [vmem:[#allocation5] sm:$0xff]
    %v60 = vld [vmem:[#allocation5 + $0x8] sm:$0xff]
    %v61 = vld [vmem:[#allocation5 + $0x10] sm:$0xf]
    %vm62 = vcmask 162816
    %v64 = vsel %vm62, %v58, 0
    %vm66 = vcmask 1043456
    %v68 = vsel %vm66, %v61, 0
    %70 = vmatprep.subr.mxu0 0.0
    %71 = vmatpush1.msra.mxu0 0.0
    %72 = vmatprep.subr.mxu0 0.0
    %73 = vmatpush1.msra.mxu0 0.0
    %74 = vmatprep.subr.mxu0 0.0
    %75 = vmatpush1.msra.mxu0 0.0
    %76 = vmatprep.subr.mxu0 0.0
    %77 = vmatpush1.msra.mxu0 0.0
    %78 = vmatprep.subr.mxu0 0.0
    %79 = vmatpush1.msra.mxu0 0.0
    %80 = vmatprep.subr.mxu0 0.0
    %81 = vmatpush1.msra.mxu0 0.0
    %82 = vmatprep.subr.mxu0 0.0
    %83 = vmatpush1.msra.mxu0 0.0
    %84 = vmatprep.subr.mxu0 0.0
    %85 = vmatpush1.msra.mxu0 0.0
    %86 = vmatprep.subr.mxu0 0.0
    %87 = vmatpush1.msra.mxu0 0.0
    %88 = vmatprep.subr.mxu0 0.0
    %89 = vmatpush1.msra.mxu0 0.0
    %90 = vmatprep.subr.mxu0 0.0
    %91 = vmatpush1.msra.mxu0 0.0
    %92 = vmatprep.subr.mxu0 0.0
    %93 = vmatpush1.msra.mxu0 0.0
    %94 = vmatprep.subr.mxu0 0.0
    %95 = vmatpush1.msra.mxu0 0.0
    %96 = vmatprep.subr.mxu0 0.0
    %97 = vmatpush1.msra.mxu0 %v68
    %98 = vmatprep.subr.mxu0 0.0
    %99 = vmatpush1.msra.mxu0 %v60
    %100 = vmatprep.subr.mxu0 0.0
    %101 = vmatpush1.msra.mxu0 %v59
    %102 = vmatprep.subr.mxu0 0.0
    %103 = vmatpush2.msra.mxu0 0.0
    %104 = vmatprep.subr.mxu0 0.0
    %105 = vmatpush2.msra.mxu0 0.0
    %106 = vmatprep.subr.mxu0 0.0
    %107 = vmatpush2.msra.mxu0 0.0
    %108 = vmatprep.subr.mxu0 0.0
    %109 = vmatpush2.msra.mxu0 0.0
    %110 = vmatprep.subr.mxu0 0.0
    %111 = vmatpush2.msra.mxu0 0.0
    %112 = vmatprep.subr.mxu0 0.0
    %113 = vmatpush2.msra.mxu0 0.0
    %114 = vmatprep.subr.mxu0 0.0
    %115 = vmatpush2.msra.mxu0 0.0
    %116 = vmatprep.subr.mxu0 0.0
    %117 = vmatpush2.msra.mxu0 0.0
    %118 = vmatprep.subr.mxu0 0.0
    %119 = vmatpush2.msra.mxu0 0.0
    %120 = vmatprep.subr.mxu0 0.0
    %121 = vmatpush2.msra.mxu0 0.0
    %122 = vmatprep.subr.mxu0 0.0
    %123 = vmatpush2.msra.mxu0 0.0
    %124 = vmatprep.subr.mxu0 0.0
    %125 = vmatpush2.msra.mxu0 0.0
    %126 = vmatprep.subr.mxu0 0.0
    %127 = vmatpush2.msra.mxu0 0.0
    %128 = vmatprep.subr.mxu0 0.0
    %129 = vmatpush2.msra.mxu0 0.0
    %130 = vmatprep.subr.mxu0 0.0
    %131 = vmatpush2.msra.mxu0 0.0
    %132 = vmatprep.subr.mxu0 0.0
    %133 = vmatpush2.msra.mxu0 0.0
    %134 = vmatprep.mubr.f32.mxu0 0.0
    %135 = vmatmul.mubr.f32.gmra.mxu0 %v64
    %v136 = vpop.f32.mrf.mxu0
    %v137 = vadd.f32 0.0, %v136
    %v138 = vpop.f32.mrf.mxu0
    %139 = vdwg.mxu0
    %v140 = vld [vmem:[%s1] sm:$0x1]
    %vm141 = vcmp.eq.s32.totalorder %v140, 2147483648
    %v142 = vcvt.s32.f32 %v140
    %v144 = vlaneseq
    %v145 = vshrl.u32 %v144, 7
    %v146 = vsub.s32 0, %v145
    %v147 = vrot.slane %v142, %v146
    %vm149 = vcmp.eq.f32.partialorder %v137, %v147
    %v150 = vsel %vm149, 1, 0
    %v151 = vcvt.s32.f32 %v150
    %v152 = vsel %vm141, 1, 0
    %v153 = vlaneseq
    %v154 = vshrl.u32 %v153, 7
    %v155 = vsub.s32 0, %v154
    %v156 = vrot.slane %v152, %v155
    %vm157 = vcmp.eq.s32.totalorder %v156, 1
    %v158 = vsel %vm157, %v137, %v151
    %v159 = vld [vmem:[#allocation7] sm:$0xff]
    %v160 = vld [vmem:[#allocation7 + $0x8] sm:$0xff]
    %v161 = vld [vmem:[#allocation7 + $0x10] sm:$0xff]
    %v162 = vld [vmem:[#allocation7 + $0x18] sm:$0xf]
    %vm163 = vcmask 228352
    %v165 = vsel %vm163, %v158, 0
    %v168 = vsel %vm66, %v162, 0
    %170 = vmatprep.subr.mxu0 0.0
    %171 = vmatpush1.msra.mxu0 0.0
    %172 = vmatprep.subr.mxu0 0.0
    %173 = vmatpush1.msra.mxu0 0.0
    %174 = vmatprep.subr.mxu0 0.0
    %175 = vmatpush1.msra.mxu0 0.0
    %176 = vmatprep.subr.mxu0 0.0
    %177 = vmatpush1.msra.mxu0 0.0
    %178 = vmatprep.subr.mxu0 0.0
    %179 = vmatpush1.msra.mxu0 0.0
    %180 = vmatprep.subr.mxu0 0.0
    %181 = vmatpush1.msra.mxu0 0.0
    %182 = vmatprep.subr.mxu0 0.0
    %183 = vmatpush1.msra.mxu0 0.0
    %184 = vmatprep.subr.mxu0 0.0
    %185 = vmatpush1.msra.mxu0 0.0
    %186 = vmatprep.subr.mxu0 0.0
    %187 = vmatpush1.msra.mxu0 0.0
    %188 = vmatprep.subr.mxu0 0.0
    %189 = vmatpush1.msra.mxu0 0.0
    %190 = vmatprep.subr.mxu0 0.0
    %191 = vmatpush1.msra.mxu0 0.0
    %192 = vmatprep.subr.mxu0 0.0
    %193 = vmatpush1.msra.mxu0 0.0
    %194 = vmatprep.subr.mxu0 0.0
    %195 = vmatpush1.msra.mxu0 %v168
    %196 = vmatprep.subr.mxu0 0.0
    %197 = vmatpush1.msra.mxu0 %v161
    %198 = vmatprep.subr.mxu0 0.0
    %199 = vmatpush1.msra.mxu0 %v160
    %200 = vmatprep.subr.mxu0 0.0
    %201 = vmatpush1.msra.mxu0 %v159
    %202 = vmatprep.subr.mxu0 0.0
    %203 = vmatpush2.msra.mxu0 0.0
    %204 = vmatprep.subr.mxu0 0.0
    %205 = vmatpush2.msra.mxu0 0.0
    %206 = vmatprep.subr.mxu0 0.0
    %207 = vmatpush2.msra.mxu0 0.0
    %208 = vmatprep.subr.mxu0 0.0
    %209 = vmatpush2.msra.mxu0 0.0
    %210 = vmatprep.subr.mxu0 0.0
    %211 = vmatpush2.msra.mxu0 0.0
    %212 = vmatprep.subr.mxu0 0.0
    %213 = vmatpush2.msra.mxu0 0.0
    %214 = vmatprep.subr.mxu0 0.0
    %215 = vmatpush2.msra.mxu0 0.0
    %216 = vmatprep.subr.mxu0 0.0
    %217 = vmatpush2.msra.mxu0 0.0
    %218 = vmatprep.subr.mxu0 0.0
    %219 = vmatpush2.msra.mxu0 0.0
    %220 = vmatprep.subr.mxu0 0.0
    %221 = vmatpush2.msra.mxu0 0.0
    %222 = vmatprep.subr.mxu0 0.0
    %223 = vmatpush2.msra.mxu0 0.0
    %224 = vmatprep.subr.mxu0 0.0
    %225 = vmatpush2.msra.mxu0 0.0
    %226 = vmatprep.subr.mxu0 0.0
    %227 = vmatpush2.msra.mxu0 0.0
    %228 = vmatprep.subr.mxu0 0.0
    %229 = vmatpush2.msra.mxu0 0.0
    %230 = vmatprep.subr.mxu0 0.0
    %231 = vmatpush2.msra.mxu0 0.0
    %232 = vmatprep.subr.mxu0 0.0
    %233 = vmatpush2.msra.mxu0 0.0
    %234 = vmatprep.mubr.f32.mxu0 0.0
    %235 = vmatmul.mubr.f32.gmra.mxu0 %v165
    %v236 = vpop.f32.mrf.mxu0
    %v237 = vadd.f32 0.0, %v236
    %v238 = vpop.f32.mrf.mxu0
    %239 = vdwg.mxu0
    %240 = vst [vmem:[#allocation8] sm:$0xf] %v237
    // Predicated region
    $region30: #{tpu_custom_call.1} parent=1 // pred_check
      _
    $region31: #{tpu_custom_call.1} parent=1 // pred_check_branch
      %242 = sbr.rel (0) target = $region33
    $region32: #{tpu_custom_call.1} parent=1 // pred_region
      %s244 = ssub.s32 64, 64
      %245 = vsyncadd [#allocation4], %s244
      %s247 = sshll.u32 [#allocation8], 4
      %s248 = int_to_ptr.vmem [resolvable:$true] %s247
      %250 = dma.vmem_to_hbm [thread:$0]  %s248, 64, %s4, [#allocation4]
    $region33: #{tpu_custom_call.1} parent=1 // pred_fallthru
      _
    // Predicated region
    $region34: #{tpu_custom_call.1} parent=1 // pred_check
      _
    $region35: #{tpu_custom_call.1} parent=1 // pred_check_branch
      %252 = sbr.rel (0) target = $region37
    $region36: #{tpu_custom_call.1} parent=1 // pred_region
      %253 = dma.done [#allocation4], 64
    $region37: #{tpu_custom_call.1} parent=1 // pred_fallthru
      _
    %254 = vsyncpa [#allocation3], 1
    %255 = vsyncpa [#allocation6], 1
    %256 = vsyncpa [#allocation4], 1

</llo_original>
